<compile_context>
chip_gen: v7x
topology: tpu7x:2x2x1
jax: 0.10.0
libtpu: 0.0.40
codegen_flags: <defaults>
</compile_context>

<pallas_src>
import functools

import jax
import jax.numpy as jnp
from jax import lax
from jax.experimental import pallas as pl
from jax.experimental.pallas import tpu as pltpu

_LANE = 128                    # lane width (last-dim alignment)
_SUBLANE = 8                   # f32 sublane alignment
_TB_MAX = 128                  # max batch tile (MXU M dim on v5e; fine on v6e/v7x)
_WEIGHT_DTYPE = jnp.bfloat16   # bf16 weights, f32 accumulation


def _round_up(x, m):
    return (x + m - 1) // m * m


def _padded_batch(b):
    bp = _round_up(b, _SUBLANE)
    if bp > _TB_MAX:
        bp = _round_up(b, _TB_MAX)
    return bp


# -----------------------------------------------------------------------------
# Kernel
# -----------------------------------------------------------------------------
def _decoder_kernel(tok_ref, h_ref, emb_ref, w_ih_ref, w_hh_ref, b_cat_ref,
                    w_out_ref, b_out_ref, out_ref, hnew_ref, x_scratch):
    """One decode step for one batch tile.

    tok_ref  : SMEM (B_pad,)       int32  token ids (scalar-prefetched)
    h_ref    : VMEM (TB, H_pad)    f32    previous hidden state
    emb_ref  : VMEM (O_pad, E_pad) f32    embedding table
    w_ih_ref : VMEM (E_pad, H_pad) bf16   W_ih^T (padded)
    w_hh_ref : VMEM (H_pad, H_pad) bf16   W_hh^T (padded)
    b_cat_ref: VMEM (1, H_pad)     f32    b_ih + b_hh
    w_out_ref: VMEM (H_pad, O_pad) bf16   out Linear weight^T (padded)
    b_out_ref: VMEM (1, O_pad)     f32    out bias; padded lanes = -1e30
    out_ref  : VMEM (TB, O_pad)    f32    log_softmax(logits)        [output]
    hnew_ref : VMEM (TB, H_pad)    f32    new hidden (aliases h buf) [output]
    x_scratch: VMEM (TB, E_pad)    f32    gathered embedding rows    [scratch]
    """
    b = pl.program_id(0)
    tb = x_scratch.shape[0]

    # --- embedding lookup: TB dynamic row reads from the VMEM-resident table --
    def gather_row(i, carry):
        tok = tok_ref[b * tb + i]
        x_scratch[pl.ds(i, 1), :] = emb_ref[pl.ds(tok, 1), :]
        return carry

    lax.fori_loop(0, tb, gather_row, 0, unroll=(tb <= 16))

    # --- RNN cell: h' = tanh(x @ W_ih^T + h @ W_hh^T + (b_ih + b_hh)) ---------
    x = x_scratch[...].astype(w_ih_ref.dtype)
    h = h_ref[...]
    pre = jnp.dot(x, w_ih_ref[...], preferred_element_type=jnp.float32)
    pre = pre + jnp.dot(h.astype(w_hh_ref.dtype), w_hh_ref[...],
                        preferred_element_type=jnp.float32)
    h_new = jnp.tanh(pre + b_cat_ref[...])                       # (TB, H_pad) f32
    hnew_ref[...] = h_new

    # --- output projection + log_softmax (padded lanes masked via bias) -------
    logits = (jnp.dot(h_new.astype(w_out_ref.dtype), w_out_ref[...],
                      preferred_element_type=jnp.float32)
              + b_out_ref[...])                                   # (TB, O_pad) f32
    m = jnp.max(logits, axis=1, keepdims=True)
    shifted = logits - m
    lse = jnp.log(jnp.sum(jnp.exp(shifted), axis=1, keepdims=True))
    out_ref[...] = (shifted - lse).astype(out_ref.dtype)


# -----------------------------------------------------------------------------
# Parameter prep (runs once, outside any decode loop)
# -----------------------------------------------------------------------------
def init_params(key, *, embedding_size, hidden_size, output_size):
    """PyTorch-layout parameters (nn.Embedding / nn.RNN / nn.Linear shapes)."""
    ks = jax.random.split(key, 7)
    scale = 0.1
    return {
        "embedding": scale * jax.random.normal(ks[0], (output_size, embedding_size), jnp.float32),
        "w_ih": scale * jax.random.normal(ks[1], (hidden_size, embedding_size), jnp.float32),
        "w_hh": scale * jax.random.normal(ks[2], (hidden_size, hidden_size), jnp.float32),
        "b_ih": scale * jax.random.normal(ks[3], (hidden_size,), jnp.float32),
        "b_hh": scale * jax.random.normal(ks[4], (hidden_size,), jnp.float32),
        "w_out": scale * jax.random.normal(ks[5], (output_size, hidden_size), jnp.float32),
        "b_out": scale * jax.random.normal(ks[6], (output_size,), jnp.float32),
    }


def prepare_params(params, weights_dtype=_WEIGHT_DTYPE):
    """Transpose / pad / cast weights for the kernel (runs once)."""
    emb = params["embedding"]                    # (O, E)
    O, E = emb.shape
    H = params["w_hh"].shape[0]
    E_pad = _round_up(E, _LANE)
    H_pad = _round_up(H, _LANE)
    O_pad = _round_up(O, _LANE)

    emb_pad = jnp.zeros((O_pad, E_pad), jnp.float32).at[:O, :E].set(emb)
    w_ih = jnp.zeros((E_pad, H_pad), jnp.float32).at[:E, :H].set(params["w_ih"].T)
    w_hh = jnp.zeros((H_pad, H_pad), jnp.float32).at[:H, :H].set(params["w_hh"].T)
    b_cat = jnp.zeros((1, H_pad), jnp.float32).at[0, :H].set(params["b_ih"] + params["b_hh"])
    w_out = jnp.zeros((H_pad, O_pad), jnp.float32).at[:H, :O].set(params["w_out"].T)
    # Padded vocab lanes masked via the bias (w_out padded cols are zero, so
    # padded-lane logits == b_out) -> no in-kernel iota/compare/select.
    b_out = jnp.full((1, O_pad), -1e30, jnp.float32).at[0, :O].set(params["b_out"])

    return {
        "emb": emb_pad,                          # f32 (dynamic row gather)
        "w_ih": w_ih.astype(weights_dtype),
        "w_hh": w_hh.astype(weights_dtype),
        "b_cat": b_cat,                          # f32
        "w_out": w_out.astype(weights_dtype),
        "b_out": b_out,                          # f32 with -1e30 padded lanes
    }


# -----------------------------------------------------------------------------
# Padded-layout decode step (reusable across autoregressive steps)
# -----------------------------------------------------------------------------
def _decoder_step_padded(tok_pad, h_pad, prep):
    """tok_pad: (B_pad,) int32; h_pad: (B_pad, H_pad) f32.

    Returns (log_probs_pad (B_pad, O_pad) f32, h_new_pad (B_pad, H_pad) f32).
    The hidden state is aliased in place, so decode loops reuse one buffer.
    """
    b_pad = tok_pad.shape[0]
    h_padw = h_pad.shape[1]
    e_pad = prep["emb"].shape[1]
    o_pad = prep["w_out"].shape[1]
    tb = min(b_pad, _TB_MAX)
    assert b_pad % tb == 0
    nb = b_pad // tb

    return pl.pallas_call(
        _decoder_kernel,
        out_shape=(
            jax.ShapeDtypeStruct((b_pad, o_pad), jnp.float32),
            jax.ShapeDtypeStruct((b_pad, h_padw), jnp.float32),
        ),
        grid_spec=pltpu.PrefetchScalarGridSpec(
            num_scalar_prefetch=1,                               # tokens -> SMEM
            grid=(nb,),
            in_specs=[
                pl.BlockSpec((tb, h_padw), lambda b, tok: (b, 0)),      # h
                pl.BlockSpec((o_pad, e_pad), lambda b, tok: (0, 0)),    # embedding
                pl.BlockSpec((e_pad, h_padw), lambda b, tok: (0, 0)),   # W_ih^T
                pl.BlockSpec((h_padw, h_padw), lambda b, tok: (0, 0)),  # W_hh^T
                pl.BlockSpec((1, h_padw), lambda b, tok: (0, 0)),       # b_ih+b_hh
                pl.BlockSpec((h_padw, o_pad), lambda b, tok: (0, 0)),   # W_out^T
                pl.BlockSpec((1, o_pad), lambda b, tok: (0, 0)),        # b_out
            ],
            out_specs=(
                pl.BlockSpec((tb, o_pad), lambda b, tok: (b, 0)),       # log_probs
                pl.BlockSpec((tb, h_padw), lambda b, tok: (b, 0)),      # h_new
            ),
            scratch_shapes=[pltpu.VMEM((tb, e_pad), jnp.float32)],      # gathered x
        ),
        input_output_aliases={1: 1},   # h_pad buffer reused for h_new
        compiler_params=pltpu.CompilerParams(
            dimension_semantics=("parallel",)),
    )(tok_pad, h_pad, prep["emb"], prep["w_ih"], prep["w_hh"], prep["b_cat"],
      prep["w_out"], prep["b_out"])


# h_pad (arg 1) is donated so the in/out alias truly reuses one buffer.
decoder_step_padded = jax.jit(_decoder_step_padded, donate_argnums=(1,))


# -----------------------------------------------------------------------------
# PyTorch-shaped forward wrapper (pads once / slices once)
# -----------------------------------------------------------------------------
@functools.partial(jax.jit, static_argnames=("output_size",))
def decoder_forward(input_tokens, hidden, prep, *, output_size):
    """Mirror of Decoder.forward (minus the never-defined attn_weights).

    input_tokens : int32 (1, B)     token ids
    hidden       : f32   (1, B, H)  previous hidden state
    returns (log_probs (B, O), hidden (1, B, H))
    """
    B = input_tokens.shape[1]
    H = hidden.shape[2]
    b_pad = _padded_batch(B)
    h_padw = prep["w_out"].shape[0]

    tok_pad = jnp.zeros((b_pad,), jnp.int32).at[:B].set(input_tokens[0].astype(jnp.int32))
    h0_pad = jnp.zeros((b_pad, h_padw), jnp.float32).at[:B, :H].set(hidden[0])

    log_probs_pad, h_new_pad = _decoder_step_padded(tok_pad, h0_pad, prep)
    return log_probs_pad[:B, :output_size], h_new_pad[:B, :H][None]


# -----------------------------------------------------------------------------
# References for sanity checks
# -----------------------------------------------------------------------------
def _reference_quantized(input_tokens, hidden, prep, *, output_size, hidden_size):
    """Pure-JAX reference using the exact same padded / bf16-cast weights."""
    f32 = jnp.float32
    tok = input_tokens[0]
    B = tok.shape[0]
    H = hidden_size
    H_pad = prep["w_hh"].shape[0]

    x = prep["emb"][tok]                                              # (B, E_pad) f32
    h0 = jnp.zeros((B, H_pad), f32).at[:, :H].set(hidden[0])
    pre = (jnp.dot(x.astype(prep["w_ih"].dtype), prep["w_ih"], preferred_element_type=f32)
           + jnp.dot(h0.astype(prep["w_hh"].dtype), prep["w_hh"], preferred_element_type=f32)
           + prep["b_cat"])
    h_new = jnp.tanh(pre)
    logits = (jnp.dot(h_new.astype(prep["w_out"].dtype), prep["w_out"],
                      preferred_element_type=f32)
              + prep["b_out"])[:, :output_size]
    return jax.nn.log_softmax(logits, axis=1), h_new[:, :H][None]


def _reference_f32(input_tokens, hidden, params):
    """Full-precision reference matching the original PyTorch math."""
    x = params["embedding"][input_tokens[0]]
    h0 = hidden[0]
    h_new = jnp.tanh(x @ params["w_ih"].T + params["b_ih"]
                     + h0 @ params["w_hh"].T + params["b_hh"])
    logits = h_new @ params["w_out"].T + params["b_out"]
    return jax.nn.log_softmax(logits, axis=1), h_new[None]


# -----------------------------------------------------------------------------
if __name__ == "__main__":
    batch_size = 2
    embedding_size = 16
    hidden_size = 32
    output_size = 16

    key = jax.random.PRNGKey(0)
    k_params, k_tok, k_hid = jax.random.split(key, 3)

    params = init_params(k_params, embedding_size=embedding_size,
                         hidden_size=hidden_size, output_size=output_size)
    prep = prepare_params(params)

    input_tokens = jax.random.randint(k_tok, (1, batch_size), 0, output_size, jnp.int32)
    hidden = 0.1 * jax.random.normal(k_hid, (1, batch_size, hidden_size), jnp.float32)

    log_probs, h_new = decoder_forward(input_tokens, hidden, prep,
                                       output_size=output_size)
    jax.block_until_ready((log_probs, h_new))

    assert log_probs.shape == (batch_size, output_size)
    assert h_new.shape == (1, batch_size, hidden_size)

    # Tight check against a reference using the identical padded/bf16 weights.
    ref_lp, ref_h = _reference_quantized(input_tokens, hidden, prep,
                                         output_size=output_size,
                                         hidden_size=hidden_size)
    assert jnp.allclose(log_probs, ref_lp, atol=1e-3, rtol=1e-3)
    assert jnp.allclose(h_new, ref_h, atol=1e-3, rtol=1e-3)

    # Loose check against the full-f32 PyTorch-equivalent math.
    f32_lp, f32_h = _reference_f32(input_tokens, hidden, params)
    assert jnp.allclose(log_probs, f32_lp, atol=5e-2)
    assert jnp.allclose(h_new, f32_h, atol=5e-2)

    # Autoregressive decode demo: padded token/hidden buffers are reused across
    # steps (no per-step re-pad / re-slice; hidden state aliased in place).
    b_pad = _padded_batch(batch_size)
    h_padw = prep["w_out"].shape[0]
    tok_pad = jnp.zeros((b_pad,), jnp.int32).at[:batch_size].set(input_tokens[0])
    h_pad = jnp.zeros((b_pad, h_padw), jnp.float32).at[:batch_size, :hidden_size].set(hidden[0])
    for _ in range(3):
        lp_pad, h_pad = decoder_step_padded(tok_pad, h_pad, prep)
        tok_pad = jnp.argmax(lp_pad, axis=1).astype(jnp.int32)   # greedy feed-back
    jax.block_until_ready((lp_pad, h_pad))
    assert lp_pad.shape == (b_pad, prep["w_out"].shape[1])

    print("KERNEL_OK")
</pallas_src>

<mosaic_0001>
module attributes {stable_mosaic.version = 11 : i64} {
  func.func @_decoder_kernel(%arg0: i32, %arg1: memref<8xi32, #tpu.memory_space<smem>>, %arg2: memref<8x128xf32, #tpu.memory_space<vmem>>, %arg3: memref<128x128xf32, #tpu.memory_space<vmem>>, %arg4: memref<128x128xbf16, #tpu.memory_space<vmem>>, %arg5: memref<128x128xbf16, #tpu.memory_space<vmem>>, %arg6: memref<1x128xf32, #tpu.memory_space<vmem>>, %arg7: memref<128x128xbf16, #tpu.memory_space<vmem>>, %arg8: memref<1x128xf32, #tpu.memory_space<vmem>>, %arg9: memref<8x128xf32, #tpu.memory_space<vmem>>, %arg10: memref<8x128xf32, #tpu.memory_space<vmem>>, %arg11: memref<8x128xf32, #tpu.memory_space<vmem>>) attributes {dimension_semantics = [#tpu.dimension_semantics<parallel>], iteration_bounds = array<i64: 1>, scalar_prefetch = 1 : i64, scratch_operands = 1 : i64, tpu.core_type = #tpu.core_type<tc>, window_params = [{transform_indices = @transform_0, window_bounds = array<i64: 8, 128>}, {pipeline_mode = #tpu.pipeline_mode<synchronous>, transform_indices = @transform_1, window_bounds = array<i64: 128, 128>}, {pipeline_mode = #tpu.pipeline_mode<synchronous>, transform_indices = @transform_2, window_bounds = array<i64: 128, 128>}, {pipeline_mode = #tpu.pipeline_mode<synchronous>, transform_indices = @transform_3, window_bounds = array<i64: 128, 128>}, {pipeline_mode = #tpu.pipeline_mode<synchronous>, transform_indices = @transform_4, window_bounds = array<i64: 1, 128>}, {pipeline_mode = #tpu.pipeline_mode<synchronous>, transform_indices = @transform_5, window_bounds = array<i64: 128, 128>}, {pipeline_mode = #tpu.pipeline_mode<synchronous>, transform_indices = @transform_6, window_bounds = array<i64: 1, 128>}, {transform_indices = @transform_7, window_bounds = array<i64: 8, 128>}, {transform_indices = @transform_8, window_bounds = array<i64: 8, 128>}]} {
    %c0_i32 = arith.constant 0 : i32
    %c8_i32 = arith.constant 8 : i32
    %0 = arith.muli %arg0, %c8_i32 : i32
    %1 = arith.addi %0, %c0_i32 : i32
    %2 = arith.index_cast %1 : i32 to index
    %3 = memref.load %arg1[%2] : memref<8xi32, #tpu.memory_space<smem>>
    %4 = arith.index_cast %3 : i32 to index
    %c0 = arith.constant 0 : index
    %5 = vector.load %arg3[%4, %c0] : memref<128x128xf32, #tpu.memory_space<vmem>>, vector<1x128xf32>
    %6 = arith.index_cast %c0_i32 : i32 to index
    %c0_0 = arith.constant 0 : index
    %7 = vector.load %arg11[%6, %c0_0] : memref<8x128xf32, #tpu.memory_space<vmem>>, vector<1x128xf32>
    tpu.vector_store %arg11[%6, %c0_0], %5 {strides = array<i32>} : memref<8x128xf32, #tpu.memory_space<vmem>>, vector<1x128xf32>,
    %c1_i32 = arith.constant 1 : i32
    %c8_i32_1 = arith.constant 8 : i32
    %8 = arith.muli %arg0, %c8_i32_1 : i32
    %9 = arith.addi %8, %c1_i32 : i32
    %10 = arith.index_cast %9 : i32 to index
    %11 = memref.load %arg1[%10] : memref<8xi32, #tpu.memory_space<smem>>
    %12 = arith.index_cast %11 : i32 to index
    %c0_2 = arith.constant 0 : index
    %13 = vector.load %arg3[%12, %c0_2] : memref<128x128xf32, #tpu.memory_space<vmem>>, vector<1x128xf32>
    %14 = arith.index_cast %c1_i32 : i32 to index
    %c0_3 = arith.constant 0 : index
    %15 = vector.load %arg11[%14, %c0_3] : memref<8x128xf32, #tpu.memory_space<vmem>>, vector<1x128xf32>
    tpu.vector_store %arg11[%14, %c0_3], %13 {strides = array<i32>} : memref<8x128xf32, #tpu.memory_space<vmem>>, vector<1x128xf32>,
    %c2_i32 = arith.constant 2 : i32
    %c8_i32_4 = arith.constant 8 : i32
    %16 = arith.muli %arg0, %c8_i32_4 : i32
    %17 = arith.addi %16, %c2_i32 : i32
    %18 = arith.index_cast %17 : i32 to index
    %19 = memref.load %arg1[%18] : memref<8xi32, #tpu.memory_space<smem>>
    %20 = arith.index_cast %19 : i32 to index
    %c0_5 = arith.constant 0 : index
    %21 = vector.load %arg3[%20, %c0_5] : memref<128x128xf32, #tpu.memory_space<vmem>>, vector<1x128xf32>
    %22 = arith.index_cast %c2_i32 : i32 to index
    %c0_6 = arith.constant 0 : index
    %23 = vector.load %arg11[%22, %c0_6] : memref<8x128xf32, #tpu.memory_space<vmem>>, vector<1x128xf32>
    tpu.vector_store %arg11[%22, %c0_6], %21 {strides = array<i32>} : memref<8x128xf32, #tpu.memory_space<vmem>>, vector<1x128xf32>,
    %c3_i32 = arith.constant 3 : i32
    %c8_i32_7 = arith.constant 8 : i32
    %24 = arith.muli %arg0, %c8_i32_7 : i32
    %25 = arith.addi %24, %c3_i32 : i32
    %26 = arith.index_cast %25 : i32 to index
    %27 = memref.load %arg1[%26] : memref<8xi32, #tpu.memory_space<smem>>
    %28 = arith.index_cast %27 : i32 to index
    %c0_8 = arith.constant 0 : index
    %29 = vector.load %arg3[%28, %c0_8] : memref<128x128xf32, #tpu.memory_space<vmem>>, vector<1x128xf32>
    %30 = arith.index_cast %c3_i32 : i32 to index
    %c0_9 = arith.constant 0 : index
    %31 = vector.load %arg11[%30, %c0_9] : memref<8x128xf32, #tpu.memory_space<vmem>>, vector<1x128xf32>
    tpu.vector_store %arg11[%30, %c0_9], %29 {strides = array<i32>} : memref<8x128xf32, #tpu.memory_space<vmem>>, vector<1x128xf32>,
    %c4_i32 = arith.constant 4 : i32
    %c8_i32_10 = arith.constant 8 : i32
    %32 = arith.muli %arg0, %c8_i32_10 : i32
    %33 = arith.addi %32, %c4_i32 : i32
    %34 = arith.index_cast %33 : i32 to index
    %35 = memref.load %arg1[%34] : memref<8xi32, #tpu.memory_space<smem>>
    %36 = arith.index_cast %35 : i32 to index
    %c0_11 = arith.constant 0 : index
    %37 = vector.load %arg3[%36, %c0_11] : memref<128x128xf32, #tpu.memory_space<vmem>>, vector<1x128xf32>
    %38 = arith.index_cast %c4_i32 : i32 to index
    %c0_12 = arith.constant 0 : index
    %39 = vector.load %arg11[%38, %c0_12] : memref<8x128xf32, #tpu.memory_space<vmem>>, vector<1x128xf32>
    tpu.vector_store %arg11[%38, %c0_12], %37 {strides = array<i32>} : memref<8x128xf32, #tpu.memory_space<vmem>>, vector<1x128xf32>,
    %c5_i32 = arith.constant 5 : i32
    %c8_i32_13 = arith.constant 8 : i32
    %40 = arith.muli %arg0, %c8_i32_13 : i32
    %41 = arith.addi %40, %c5_i32 : i32
    %42 = arith.index_cast %41 : i32 to index
    %43 = memref.load %arg1[%42] : memref<8xi32, #tpu.memory_space<smem>>
    %44 = arith.index_cast %43 : i32 to index
    %c0_14 = arith.constant 0 : index
    %45 = vector.load %arg3[%44, %c0_14] : memref<128x128xf32, #tpu.memory_space<vmem>>, vector<1x128xf32>
    %46 = arith.index_cast %c5_i32 : i32 to index
    %c0_15 = arith.constant 0 : index
    %47 = vector.load %arg11[%46, %c0_15] : memref<8x128xf32, #tpu.memory_space<vmem>>, vector<1x128xf32>
    tpu.vector_store %arg11[%46, %c0_15], %45 {strides = array<i32>} : memref<8x128xf32, #tpu.memory_space<vmem>>, vector<1x128xf32>,
    %c6_i32 = arith.constant 6 : i32
    %c8_i32_16 = arith.constant 8 : i32
    %48 = arith.muli %arg0, %c8_i32_16 : i32
    %49 = arith.addi %48, %c6_i32 : i32
    %50 = arith.index_cast %49 : i32 to index
    %51 = memref.load %arg1[%50] : memref<8xi32, #tpu.memory_space<smem>>
    %52 = arith.index_cast %51 : i32 to index
    %c0_17 = arith.constant 0 : index
    %53 = vector.load %arg3[%52, %c0_17] : memref<128x128xf32, #tpu.memory_space<vmem>>, vector<1x128xf32>
    %54 = arith.index_cast %c6_i32 : i32 to index
    %c0_18 = arith.constant 0 : index
    %55 = vector.load %arg11[%54, %c0_18] : memref<8x128xf32, #tpu.memory_space<vmem>>, vector<1x128xf32>
    tpu.vector_store %arg11[%54, %c0_18], %53 {strides = array<i32>} : memref<8x128xf32, #tpu.memory_space<vmem>>, vector<1x128xf32>,
    %c7_i32 = arith.constant 7 : i32
    %c8_i32_19 = arith.constant 8 : i32
    %56 = arith.muli %arg0, %c8_i32_19 : i32
    %57 = arith.addi %56, %c7_i32 : i32
    %58 = arith.index_cast %57 : i32 to index
    %59 = memref.load %arg1[%58] : memref<8xi32, #tpu.memory_space<smem>>
    %60 = arith.index_cast %59 : i32 to index
    %c0_20 = arith.constant 0 : index
    %61 = vector.load %arg3[%60, %c0_20] : memref<128x128xf32, #tpu.memory_space<vmem>>, vector<1x128xf32>
    %62 = arith.index_cast %c7_i32 : i32 to index
    %c0_21 = arith.constant 0 : index
    %63 = vector.load %arg11[%62, %c0_21] : memref<8x128xf32, #tpu.memory_space<vmem>>, vector<1x128xf32>
    tpu.vector_store %arg11[%62, %c0_21], %61 {strides = array<i32>} : memref<8x128xf32, #tpu.memory_space<vmem>>, vector<1x128xf32>,
    %c8_i32_22 = arith.constant 8 : i32
    %c0_23 = arith.constant 0 : index
    %c0_24 = arith.constant 0 : index
    %64 = vector.load %arg11[%c0_23, %c0_24] : memref<8x128xf32, #tpu.memory_space<vmem>>, vector<8x128xf32>
    %65 = arith.truncf %64 : vector<8x128xf32> to vector<8x128xbf16>
    %c0_25 = arith.constant 0 : index
    %c0_26 = arith.constant 0 : index
    %66 = vector.load %arg2[%c0_25, %c0_26] : memref<8x128xf32, #tpu.memory_space<vmem>>, vector<8x128xf32>
    %c0_27 = arith.constant 0 : index
    %c0_28 = arith.constant 0 : index
    %67 = vector.load %arg4[%c0_27, %c0_28] : memref<128x128xbf16, #tpu.memory_space<vmem>>, vector<128x128xbf16>
    %cst = arith.constant dense<0.000000e+00> : vector<8x128xf32>
    %68 = tpu.matmul %65, %67, %cst {dimension_numbers = #tpu.dot_dimension_numbers<[1], [0], [0], [1], [0, 0, 1, 1], [], []>} : vector<8x128xbf16>, vector<128x128xbf16>, vector<8x128xf32> -> vector<8x128xf32>
    %69 = arith.truncf %66 : vector<8x128xf32> to vector<8x128xbf16>
    %c0_29 = arith.constant 0 : index
    %c0_30 = arith.constant 0 : index
    %70 = vector.load %arg5[%c0_29, %c0_30] : memref<128x128xbf16, #tpu.memory_space<vmem>>, vector<128x128xbf16>
    %cst_31 = arith.constant dense<0.000000e+00> : vector<8x128xf32>
    %71 = tpu.matmul %69, %70, %cst_31 {dimension_numbers = #tpu.dot_dimension_numbers<[1], [0], [0], [1], [0, 0, 1, 1], [], []>} : vector<8x128xbf16>, vector<128x128xbf16>, vector<8x128xf32> -> vector<8x128xf32>
    %72 = arith.addf %68, %71 : vector<8x128xf32>
    %c0_32 = arith.constant 0 : index
    %c0_33 = arith.constant 0 : index
    %73 = vector.load %arg6[%c0_32, %c0_33] : memref<1x128xf32, #tpu.memory_space<vmem>>, vector<1x128xf32>
    %74 = vector.broadcast %73 : vector<1x128xf32> to vector<8x128xf32>
    %75 = arith.addf %72, %74 : vector<8x128xf32>
    %76 = math.tanh %75 : vector<8x128xf32>
    %c0_34 = arith.constant 0 : index
    %c0_35 = arith.constant 0 : index
    %77 = vector.load %arg10[%c0_34, %c0_35] : memref<8x128xf32, #tpu.memory_space<vmem>>, vector<8x128xf32>
    tpu.vector_store %arg10[%c0_34, %c0_35], %76 {strides = array<i32>} : memref<8x128xf32, #tpu.memory_space<vmem>>, vector<8x128xf32>,
    %78 = arith.truncf %76 : vector<8x128xf32> to vector<8x128xbf16>
    %c0_36 = arith.constant 0 : index
    %c0_37 = arith.constant 0 : index
    %79 = vector.load %arg7[%c0_36, %c0_37] : memref<128x128xbf16, #tpu.memory_space<vmem>>, vector<128x128xbf16>
    %cst_38 = arith.constant dense<0.000000e+00> : vector<8x128xf32>
    %80 = tpu.matmul %78, %79, %cst_38 {dimension_numbers = #tpu.dot_dimension_numbers<[1], [0], [0], [1], [0, 0, 1, 1], [], []>} : vector<8x128xbf16>, vector<128x128xbf16>, vector<8x128xf32> -> vector<8x128xf32>
    %c0_39 = arith.constant 0 : index
    %c0_40 = arith.constant 0 : index
    %81 = vector.load %arg8[%c0_39, %c0_40] : memref<1x128xf32, #tpu.memory_space<vmem>>, vector<1x128xf32>
    %82 = vector.broadcast %81 : vector<1x128xf32> to vector<8x128xf32>
    %83 = arith.addf %80, %82 : vector<8x128xf32>
    %cst_41 = arith.constant dense<0xFF800000> : vector<8xf32>
    %84 = vector.multi_reduction <maximumf>, %83, %cst_41 [1] : vector<8x128xf32> to vector<8xf32>
    %85 = vector.shape_cast %84 : vector<8xf32> to vector<8x1xf32>
    %86 = vector.broadcast %85 : vector<8x1xf32> to vector<8x128xf32>
    %87 = arith.subf %83, %86 : vector<8x128xf32>
    %88 = math.exp %87 : vector<8x128xf32>
    %cst_42 = arith.constant dense<0.000000e+00> : vector<8xf32>
    %89 = vector.multi_reduction <add>, %88, %cst_42 [1] : vector<8x128xf32> to vector<8xf32>
    %90 = vector.shape_cast %89 : vector<8xf32> to vector<8x1xf32>
    %91 = math.log %90 : vector<8x1xf32>
    %92 = vector.broadcast %91 : vector<8x1xf32> to vector<8x128xf32>
    %93 = arith.subf %87, %92 : vector<8x128xf32>
    %c0_43 = arith.constant 0 : index
    %c0_44 = arith.constant 0 : index
    %94 = vector.load %arg9[%c0_43, %c0_44] : memref<8x128xf32, #tpu.memory_space<vmem>>, vector<8x128xf32>
    tpu.vector_store %arg9[%c0_43, %c0_44], %93 {strides = array<i32>} : memref<8x128xf32, #tpu.memory_space<vmem>>, vector<8x128xf32>,
    return
  }
  func.func @transform_0(%arg0: i32, %arg1: memref<8xi32, #tpu.memory_space<smem>>) -> (i32, i32) {
    %c0_i32 = arith.constant 0 : i32
    %c0_i32_0 = arith.constant 0 : i32
    return %arg0, %c0_i32 : i32, i32
  }
  func.func @transform_1(%arg0: i32, %arg1: memref<8xi32, #tpu.memory_space<smem>>) -> (i32, i32) {
    %c0_i32 = arith.constant 0 : i32
    %c0_i32_0 = arith.constant 0 : i32
    %c0_i32_1 = arith.constant 0 : i32
    return %c0_i32, %c0_i32_0 : i32, i32
  }
  func.func @transform_2(%arg0: i32, %arg1: memref<8xi32, #tpu.memory_space<smem>>) -> (i32, i32) {
    %c0_i32 = arith.constant 0 : i32
    %c0_i32_0 = arith.constant 0 : i32
    %c0_i32_1 = arith.constant 0 : i32
    return %c0_i32, %c0_i32_0 : i32, i32
  }
  func.func @transform_3(%arg0: i32, %arg1: memref<8xi32, #tpu.memory_space<smem>>) -> (i32, i32) {
    %c0_i32 = arith.constant 0 : i32
    %c0_i32_0 = arith.constant 0 : i32
    %c0_i32_1 = arith.constant 0 : i32
    return %c0_i32, %c0_i32_0 : i32, i32
  }
  func.func @transform_4(%arg0: i32, %arg1: memref<8xi32, #tpu.memory_space<smem>>) -> (i32, i32) {
    %c0_i32 = arith.constant 0 : i32
    %c0_i32_0 = arith.constant 0 : i32
    %c0_i32_1 = arith.constant 0 : i32
    return %c0_i32, %c0_i32_0 : i32, i32
  }
  func.func @transform_5(%arg0: i32, %arg1: memref<8xi32, #tpu.memory_space<smem>>) -> (i32, i32) {
    %c0_i32 = arith.constant 0 : i32
    %c0_i32_0 = arith.constant 0 : i32
    %c0_i32_1 = arith.constant 0 : i32
    return %c0_i32, %c0_i32_0 : i32, i32
  }
  func.func @transform_6(%arg0: i32, %arg1: memref<8xi32, #tpu.memory_space<smem>>) -> (i32, i32) {
    %c0_i32 = arith.constant 0 : i32
    %c0_i32_0 = arith.constant 0 : i32
    %c0_i32_1 = arith.constant 0 : i32
    return %c0_i32, %c0_i32_0 : i32, i32
  }
  func.func @transform_7(%arg0: i32, %arg1: memref<8xi32, #tpu.memory_space<smem>>) -> (i32, i32) {
    %c0_i32 = arith.constant 0 : i32
    %c0_i32_0 = arith.constant 0 : i32
    return %arg0, %c0_i32 : i32, i32
  }
  func.func @transform_8(%arg0: i32, %arg1: memref<8xi32, #tpu.memory_space<smem>>) -> (i32, i32) {
    %c0_i32 = arith.constant 0 : i32
    %c0_i32_0 = arith.constant 0 : i32
    return %arg0, %c0_i32 : i32, i32
  }
}

</mosaic_0001>

<llo_original>
// kernel: decoder_forward.1
$region0: #{decoder_forward.1}
  #allocation0 [shape = 'u32[]', space=smem, size = 0x4, offset = 0x4, fixed_abs, tag = 'smem constant byte address 0x4 - core index']
  #allocation1 [shape = 'u32[144,128]{1,0:T(1,128)}', space=vmem, size = 0x12000, scoped, tag = 'internal scratch']
  #allocation2 [shape = 'f32[8,128]{1,0:T(8,128)}', space=vmem, size = 0x1000, scoped, tag = 'scratch operand']
  #allocation3 [shape = 's32[1]{0}', space=sflag, size = 0x4, scoped, tag = 'scoped memory for decoder_forward.1']
  #allocation4 [shape = 'u8[512]{0}', space=smem, size = 0x200, scoped, tag = 'prefetched SMEM operand 0']
  %s0 = inlined_call_operand.vmem [shape: s32[8], index: 0, kind: input, shape index: {}]
  %s1 = inlined_call_operand.vmem [shape: f32[8,128], index: 1, kind: input, shape index: {}, may-alias: {1,9}]
  %s2 = inlined_call_operand.hbm [shape: f32[128,128], index: 2, kind: input, shape index: {}]
  %s3 = inlined_call_operand.hbm [shape: bf16[128,128], index: 3, kind: input, shape index: {}]
  %s4 = inlined_call_operand.hbm [shape: bf16[128,128], index: 4, kind: input, shape index: {}]
  %s5 = inlined_call_operand.vmem [shape: f32[1,128], index: 5, kind: input, shape index: {}]
  %s6 = inlined_call_operand.hbm [shape: bf16[128,128], index: 6, kind: input, shape index: {}]
  %s7 = inlined_call_operand.vmem [shape: f32[1,128], index: 7, kind: input, shape index: {}]
  %s8 = inlined_call_operand.vmem [shape: f32[8,128], index: 8, kind: output, shape index: {0}]
  %s9 = inlined_call_operand.vmem [shape: f32[8,128], index: 9, kind: output, shape index: {1}, may-alias: {1,9}]
  %10 = xla_tuple %s8, %s9
  %s11 = sld [smem:[#allocation0]]
  $region62: #{decoder_forward.1} parent=0
    _
  %s13 = ssub.s32 1, %s11
  %s14 = scalar_select 0, %s13, %s11
  %s15 = sshll.u32 %s0, 4
  %s16 = int_to_ptr.vmem [resolvable:$true] %s15
  %18 = dma.vmem_to_smem %s16, 16, [#allocation4], [#allocation3]
  %19 = dma.done [#allocation3], 16
  %20 = sfence
  $region1: #{decoder_forward.1} parent=0
    #allocation5 [shape = 'u8[65536]{0}', space=vmem, size = 0x10000, scoped, tag = 'input window, operand 2, single buffered']
    #allocation6 [shape = 's32[1]{0}', space=sflag, size = 0x4, scoped, tag = 'scoped memory for decoder_forward.1']
    #allocation7 [shape = 'u8[32768]{0}', space=vmem, size = 0x8000, scoped, tag = 'input window, operand 3, single buffered']
    #allocation8 [shape = 's32[1]{0}', space=sflag, size = 0x4, scoped, tag = 'scoped memory for decoder_forward.1']
    #allocation9 [shape = 'u8[32768]{0}', space=vmem, size = 0x8000, scoped, tag = 'input window, operand 4, single buffered']
    #allocation10 [shape = 'u8[32768]{0}', space=vmem, size = 0x8000, scoped, tag = 'input window, operand 6, single buffered']
    #allocation11 [shape = 's32[1]{0}', space=sflag, size = 0x4, scoped, tag = 'scoped memory for decoder_forward.1']
    %21 = vsyncpa [#allocation6], 0
    %22 = vsyncpa [#allocation8], 0
    %23 = vsyncpa [#allocation11], 0
    // Predicated region
    $region2: #{decoder_forward.1} parent=1 // pred_check
      _
    $region3: #{decoder_forward.1} parent=1 // pred_check_branch
      %25 = sbr.rel (0) target = $region5
    $region4: #{decoder_forward.1} parent=1 // pred_region
      _
    $region5: #{decoder_forward.1} parent=1 // pred_fallthru
      _
    // Predicated region
    $region6: #{decoder_forward.1} parent=1 // pred_check
      _
    $region7: #{decoder_forward.1} parent=1 // pred_check_branch
      %27 = sbr.rel (0) target = $region9
    $region8: #{decoder_forward.1} parent=1 // pred_region
      %s29 = ssub.s32 2048, 2048
      %30 = vsyncadd [#allocation6], %s29
      %s31 = sshll.u32 [#allocation5], 4
      %s32 = int_to_ptr.vmem [resolvable:$true] %s31
      %37 = dma.hbm_to_vmem [thread:$0]  %s2, 2048, %s32, [#allocation6], 128, 128, 8
    $region9: #{decoder_forward.1} parent=1 // pred_fallthru
      _
    // Predicated region
    $region10: #{decoder_forward.1} parent=1 // pred_check
      _
    $region11: #{decoder_forward.1} parent=1 // pred_check_branch
      %39 = sbr.rel (0) target = $region13
    $region12: #{decoder_forward.1} parent=1 // pred_region
      %s41 = ssub.s32 1024, 1024
      %42 = vsyncadd [#allocation8], %s41
      %s43 = sshll.u32 [#allocation7], 4
      %s44 = int_to_ptr.vmem [resolvable:$true] %s43
      %49 = dma.hbm_to_vmem [thread:$0]  %s3, 1024, %s44, [#allocation8], 64, 64, 4
    $region13: #{decoder_forward.1} parent=1 // pred_fallthru
      _
    // Predicated region
    $region14: #{decoder_forward.1} parent=1 // pred_check
      _
    $region15: #{decoder_forward.1} parent=1 // pred_check_branch
      %51 = sbr.rel (0) target = $region17
    $region16: #{decoder_forward.1} parent=1 // pred_region
      %s53 = ssub.s32 1024, 1024
      %54 = vsyncadd [#allocation8], %s53
      %s55 = sshll.u32 [#allocation9], 4
      %s56 = int_to_ptr.vmem [resolvable:$true] %s55
      %61 = dma.hbm_to_vmem [thread:$0]  %s4, 1024, %s56, [#allocation8], 64, 64, 4
    $region17: #{decoder_forward.1} parent=1 // pred_fallthru
      _
    // Predicated region
    $region18: #{decoder_forward.1} parent=1 // pred_check
      _
    $region19: #{decoder_forward.1} parent=1 // pred_check_branch
      %63 = sbr.rel (0) target = $region21
    $region20: #{decoder_forward.1} parent=1 // pred_region
      _
    $region21: #{decoder_forward.1} parent=1 // pred_fallthru
      _
    // Predicated region
    $region22: #{decoder_forward.1} parent=1 // pred_check
      _
    $region23: #{decoder_forward.1} parent=1 // pred_check_branch
      %65 = sbr.rel (0) target = $region25
    $region24: #{decoder_forward.1} parent=1 // pred_region
      %s67 = ssub.s32 1024, 1024
      %68 = vsyncadd [#allocation11], %s67
      %s69 = sshll.u32 [#allocation10], 4
      %s70 = int_to_ptr.vmem [resolvable:$true] %s69
      %75 = dma.hbm_to_vmem [thread:$0]  %s6, 1024, %s70, [#allocation11], 64, 64, 4
    $region25: #{decoder_forward.1} parent=1 // pred_fallthru
      _
    // Predicated region
    $region26: #{decoder_forward.1} parent=1 // pred_check
      _
    $region27: #{decoder_forward.1} parent=1 // pred_check_branch
      %77 = sbr.rel (0) target = $region29
    $region28: #{decoder_forward.1} parent=1 // pred_region
      _
    $region29: #{decoder_forward.1} parent=1 // pred_fallthru
      _
    // Predicated region
    $region30: #{decoder_forward.1} parent=1 // pred_check
      _
    $region31: #{decoder_forward.1} parent=1 // pred_check_branch
      %79 = sbr.rel (0) target = $region33
    $region32: #{decoder_forward.1} parent=1 // pred_region
      %80 = dma.done [#allocation6], 2048
    $region33: #{decoder_forward.1} parent=1 // pred_fallthru
      _
    // Predicated region
    $region34: #{decoder_forward.1} parent=1 // pred_check
      _
    $region35: #{decoder_forward.1} parent=1 // pred_check_branch
      %82 = sbr.rel (0) target = $region37
    $region36: #{decoder_forward.1} parent=1 // pred_region
      %83 = dma.done [#allocation8], 1024
    $region37: #{decoder_forward.1} parent=1 // pred_fallthru
      _
    // Predicated region
    $region38: #{decoder_forward.1} parent=1 // pred_check
      _
    $region39: #{decoder_forward.1} parent=1 // pred_check_branch
      %85 = sbr.rel (0) target = $region41
    $region40: #{decoder_forward.1} parent=1 // pred_region
      %86 = dma.done [#allocation8], 1024
    $region41: #{decoder_forward.1} parent=1 // pred_fallthru
      _
    // Predicated region
    $region42: #{decoder_forward.1} parent=1 // pred_check
      _
    $region43: #{decoder_forward.1} parent=1 // pred_check_branch
      %88 = sbr.rel (0) target = $region45
    $region44: #{decoder_forward.1} parent=1 // pred_region
      %89 = dma.done [#allocation11], 1024
    $region45: #{decoder_forward.1} parent=1 // pred_fallthru
      _
    %s91 = smul.u32 0, 8
    %s92 = sld [smem:[#allocation4 + %s91]]
    %s93 = scalar_lea.vmem [#allocation5], %s92
    %v94 = vld [vmem:[%s93] sm:$0x1]
    %95 = vst [vmem:[#allocation2] sm:$0x1] %v94
    %s96 = sadd.s32 %s91, 1
    %s97 = sld [smem:[#allocation4 + %s96]]
    %s98 = scalar_lea.vmem [#allocation5], %s97
    %v99 = vld [vmem:[%s98] sm:$0x1]
    %100 = vst [vmem:[#allocation2 + $0x1] sm:$0x1] %v99
    %s101 = sadd.s32 %s91, 2
    %s102 = sld [smem:[#allocation4 + %s101]]
    %s103 = scalar_lea.vmem [#allocation5], %s102
    %v104 = vld [vmem:[%s103] sm:$0x1]
    %105 = vst [vmem:[#allocation2 + $0x2] sm:$0x1] %v104
    %s106 = sadd.s32 %s91, 3
    %s107 = sld [smem:[#allocation4 + %s106]]
    %s108 = scalar_lea.vmem [#allocation5], %s107
    %v109 = vld [vmem:[%s108] sm:$0x1]
    %110 = vst [vmem:[#allocation2 + $0x3] sm:$0x1] %v109
    %s111 = sadd.s32 %s91, 4
    %s112 = sld [smem:[#allocation4 + %s111]]
    %s113 = scalar_lea.vmem [#allocation5], %s112
    %v114 = vld [vmem:[%s113] sm:$0x1]
    %115 = vst [vmem:[#allocation2 + $0x4] sm:$0x1] %v114
    %s116 = sadd.s32 %s91, 5
    %s117 = sld [smem:[#allocation4 + %s116]]
    %s118 = scalar_lea.vmem [#allocation5], %s117
    %v119 = vld [vmem:[%s118] sm:$0x1]
    %120 = vst [vmem:[#allocation2 + $0x5] sm:$0x1] %v119
    %s121 = sadd.s32 %s91, 6
    %s122 = sld [smem:[#allocation4 + %s121]]
    %s123 = scalar_lea.vmem [#allocation5], %s122
    %v124 = vld [vmem:[%s123] sm:$0x1]
    %125 = vst [vmem:[#allocation2 + $0x6] sm:$0x1] %v124
    %s126 = sadd.s32 %s91, 7
    %s127 = sld [smem:[#allocation4 + %s126]]
    %s128 = scalar_lea.vmem [#allocation5], %s127
    %v129 = vld [vmem:[%s128] sm:$0x1]
    %130 = vst [vmem:[#allocation2 + $0x7] sm:$0x1] %v129
    %v131 = vld [vmem:[#allocation2] sm:$0xff]
    %v132 = vpack.c.bf16 %v131, %v131
    %v133 = vld [vmem:[%s1] sm:$0xff]
    %v134 = vld [vmem:[#allocation7] sm:$0xf]
    %v135 = vld [vmem:[#allocation7 + $0x4] sm:$0xf]
    %v136 = vld [vmem:[#allocation7 + $0x8] sm:$0xf]
    %v137 = vld [vmem:[#allocation7 + $0xc] sm:$0xf]
    %v138 = vld [vmem:[#allocation7 + $0x10] sm:$0xf]
    %v139 = vld [vmem:[#allocation7 + $0x14] sm:$0xf]
    %v140 = vld [vmem:[#allocation7 + $0x18] sm:$0xf]
    %v141 = vld [vmem:[#allocation7 + $0x1c] sm:$0xf]
    %v142 = vld [vmem:[#allocation7 + $0x20] sm:$0xf]
    %v143 = vld [vmem:[#allocation7 + $0x24] sm:$0xf]
    %v144 = vld [vmem:[#allocation7 + $0x28] sm:$0xf]
    %v145 = vld [vmem:[#allocation7 + $0x2c] sm:$0xf]
    %v146 = vld [vmem:[#allocation7 + $0x30] sm:$0xf]
    %v147 = vld [vmem:[#allocation7 + $0x34] sm:$0xf]
    %v148 = vld [vmem:[#allocation7 + $0x38] sm:$0xf]
    %v149 = vld [vmem:[#allocation7 + $0x3c] sm:$0xf]
    %v150 = vpack.c.bf16 %v133, %v133
    %v151 = vld [vmem:[#allocation9] sm:$0xf]
    %v152 = vld [vmem:[#allocation9 + $0x4] sm:$0xf]
    %v153 = vld [vmem:[#allocation9 + $0x8] sm:$0xf]
    %v154 = vld [vmem:[#allocation9 + $0xc] sm:$0xf]
    %v155 = vld [vmem:[#allocation9 + $0x10] sm:$0xf]
    %v156 = vld [vmem:[#allocation9 + $0x14] sm:$0xf]
    %v157 = vld [vmem:[#allocation9 + $0x18] sm:$0xf]
    %v158 = vld [vmem:[#allocation9 + $0x1c] sm:$0xf]
    %v159 = vld [vmem:[#allocation9 + $0x20] sm:$0xf]
    %v160 = vld [vmem:[#allocation9 + $0x24] sm:$0xf]
    %v161 = vld [vmem:[#allocation9 + $0x28] sm:$0xf]
    %v162 = vld [vmem:[#allocation9 + $0x2c] sm:$0xf]
    %v163 = vld [vmem:[#allocation9 + $0x30] sm:$0xf]
    %v164 = vld [vmem:[#allocation9 + $0x34] sm:$0xf]
    %v165 = vld [vmem:[#allocation9 + $0x38] sm:$0xf]
    %v166 = vld [vmem:[#allocation9 + $0x3c] sm:$0xf]
    %v183 = vunpack.c.l.b16 %v151
    %v184 = vunpack.c.l.b16 %v152
    %v185 = vunpack.c.l.b16 %v153
    %v186 = vunpack.c.l.b16 %v154
    %v187 = vunpack.c.l.b16 %v155
    %v188 = vunpack.c.l.b16 %v156
    %v189 = vunpack.c.l.b16 %v157
    %v190 = vunpack.c.l.b16 %v158
    %v191 = vunpack.c.l.b16 %v159
    %v192 = vunpack.c.l.b16 %v160
    %v193 = vunpack.c.l.b16 %v161
    %v194 = vunpack.c.l.b16 %v162
    %v195 = vunpack.c.l.b16 %v163
    %v196 = vunpack.c.l.b16 %v164
    %v197 = vunpack.c.l.b16 %v165
    %v198 = vunpack.c.l.b16 %v166
    %v199 = vpack.c.b16 %v184, %v183
    %v200 = vpack.c.b16 %v186, %v185
    %v201 = vpack.c.b16 %v188, %v187
    %v202 = vpack.c.b16 %v190, %v189
    %v203 = vpack.c.b16 %v192, %v191
    %v204 = vpack.c.b16 %v194, %v193
    %v205 = vpack.c.b16 %v196, %v195
    %v206 = vpack.c.b16 %v198, %v197
    %215 = vmatprep.subr.bf16.mxu0 0
    %216 = vmatpush1.bf16.msra.mxu0 %v199
    %217 = vmatprep.subr.bf16.mxu0 0
    %218 = vmatpush1.bf16.msra.mxu0 %v200
    %219 = vmatprep.subr.bf16.mxu0 0
    %220 = vmatpush1.bf16.msra.mxu0 %v201
    %221 = vmatprep.subr.bf16.mxu0 0
    %222 = vmatpush1.bf16.msra.mxu0 %v202
    %223 = vmatprep.subr.bf16.mxu0 0
    %224 = vmatpush1.bf16.msra.mxu0 %v203
    %225 = vmatprep.subr.bf16.mxu0 0
    %226 = vmatpush1.bf16.msra.mxu0 %v204
    %227 = vmatprep.subr.bf16.mxu0 0
    %228 = vmatpush1.bf16.msra.mxu0 %v205
    %229 = vmatprep.subr.bf16.mxu0 0
    %230 = vmatpush1.bf16.msra.mxu0 %v206
    %231 = vmatprep.subr.bf16.mxu0 0
    %232 = vmatpush1.bf16.msra.mxu0 0
    %233 = vmatprep.subr.bf16.mxu0 0
    %234 = vmatpush1.bf16.msra.mxu0 0
    %235 = vmatprep.subr.bf16.mxu0 0
    %236 = vmatpush1.bf16.msra.mxu0 0
    %237 = vmatprep.subr.bf16.mxu0 0
    %238 = vmatpush1.bf16.msra.mxu0 0
    %239 = vmatprep.subr.bf16.mxu0 0
    %240 = vmatpush1.bf16.msra.mxu0 0
    %241 = vmatprep.subr.bf16.mxu0 0
    %242 = vmatpush1.bf16.msra.mxu0 0
    %243 = vmatprep.subr.bf16.mxu0 0
    %244 = vmatpush1.bf16.msra.mxu0 0
    %245 = vmatprep.subr.bf16.mxu0 0
    %246 = vmatpush1.bf16.msra.mxu0 0
    %247 = vmatprep.mubr.bf16.mxu0 0
    %248 = vmatmul.mubr.bf16.gmra.mrb[0].mxu0 %v150
    %v249 = vpop.f32.mrb[0].mxu0
    %v250 = vadd.f32 0.0, %v249
    %v251 = vpop.f32.mrb[0].mxu0
    %v252 = vpop.f32.mrb[0].mxu0
    %v253 = vpop.f32.mrb[0].mxu0
    %254 = vdwg.mxu0
    %v271 = vunpack.c.l.b16 %v134
    %v272 = vunpack.c.l.b16 %v135
    %v273 = vunpack.c.l.b16 %v136
    %v274 = vunpack.c.l.b16 %v137
    %v275 = vunpack.c.l.b16 %v138
    %v276 = vunpack.c.l.b16 %v139
    %v277 = vunpack.c.l.b16 %v140
    %v278 = vunpack.c.l.b16 %v141
    %v279 = vunpack.c.l.b16 %v142
    %v280 = vunpack.c.l.b16 %v143
    %v281 = vunpack.c.l.b16 %v144
    %v282 = vunpack.c.l.b16 %v145
    %v283 = vunpack.c.l.b16 %v146
    %v284 = vunpack.c.l.b16 %v147
    %v285 = vunpack.c.l.b16 %v148
    %v286 = vunpack.c.l.b16 %v149
    %v287 = vpack.c.b16 %v272, %v271
    %v288 = vpack.c.b16 %v274, %v273
    %v289 = vpack.c.b16 %v276, %v275
    %v290 = vpack.c.b16 %v278, %v277
    %v291 = vpack.c.b16 %v280, %v279
    %v292 = vpack.c.b16 %v282, %v281
    %v293 = vpack.c.b16 %v284, %v283
    %v294 = vpack.c.b16 %v286, %v285
    %303 = vmatprep.subr.bf16.mxu0 0
    %304 = vmatpush1.bf16.msra.mxu0 %v287
    %305 = vmatprep.subr.bf16.mxu0 0
    %306 = vmatpush1.bf16.msra.mxu0 %v288
    %307 = vmatprep.subr.bf16.mxu0 0
    %308 = vmatpush1.bf16.msra.mxu0 %v289
    %309 = vmatprep.subr.bf16.mxu0 0
    %310 = vmatpush1.bf16.msra.mxu0 %v290
    %311 = vmatprep.subr.bf16.mxu0 0
    %312 = vmatpush1.bf16.msra.mxu0 %v291
    %313 = vmatprep.subr.bf16.mxu0 0
    %314 = vmatpush1.bf16.msra.mxu0 %v292
    %315 = vmatprep.subr.bf16.mxu0 0
    %316 = vmatpush1.bf16.msra.mxu0 %v293
    %317 = vmatprep.subr.bf16.mxu0 0
    %318 = vmatpush1.bf16.msra.mxu0 %v294
    %319 = vmatprep.subr.bf16.mxu0 0
    %320 = vmatpush1.bf16.msra.mxu0 0
    %321 = vmatprep.subr.bf16.mxu0 0
    %322 = vmatpush1.bf16.msra.mxu0 0
    %323 = vmatprep.subr.bf16.mxu0 0
    %324 = vmatpush1.bf16.msra.mxu0 0
    %325 = vmatprep.subr.bf16.mxu0 0
    %326 = vmatpush1.bf16.msra.mxu0 0
    %327 = vmatprep.subr.bf16.mxu0 0
    %328 = vmatpush1.bf16.msra.mxu0 0
    %329 = vmatprep.subr.bf16.mxu0 0
    %330 = vmatpush1.bf16.msra.mxu0 0
    %331 = vmatprep.subr.bf16.mxu0 0
    %332 = vmatpush1.bf16.msra.mxu0 0
    %333 = vmatprep.subr.bf16.mxu0 0
    %334 = vmatpush1.bf16.msra.mxu0 0
    %335 = vmatprep.mubr.bf16.mxu0 0
    %336 = vmatmul.mubr.bf16.gmra.mrb[0].mxu0 %v132
    %v337 = vpop.f32.mrb[0].mxu0
    %v338 = vadd.f32 %v250, %v337
    %v339 = vpop.f32.mrb[0].mxu0
    %v340 = vpop.f32.mrb[0].mxu0
    %v341 = vpop.f32.mrb[0].mxu0
    %342 = vdwg.mxu0
    %v343 = vld [vmem:[%s5] sm:$0x1]
    %v345 = vlaneseq
    %v346 = vshrl.u32 %v345, 7
    %v347 = vsub.s32 0, %v346
    %v348 = vrot.slane %v343, %v347
    %v350 = vadd.f32 %v338, %v348
    %v351 = vtanh.pop %v350
    %352 = vst [vmem:[%s9] sm:$0xff] %v351
    %v353 = vpack.c.bf16 %v351, %v351
    %v354 = vld [vmem:[#allocation10] sm:$0xf]
    %v355 = vld [vmem:[#allocation10 + $0x4] sm:$0xf]
    %v356 = vld [vmem:[#allocation10 + $0x8] sm:$0xf]
    %v357 = vld [vmem:[#allocation10 + $0xc] sm:$0xf]
    %v358 = vld [vmem:[#allocation10 + $0x10] sm:$0xf]
    %v359 = vld [vmem:[#allocation10 + $0x14] sm:$0xf]
    %v360 = vld [vmem:[#allocation10 + $0x18] sm:$0xf]
    %v361 = vld [vmem:[#allocation10 + $0x1c] sm:$0xf]
    %v362 = vld [vmem:[#allocation10 + $0x20] sm:$0xf]
    %v363 = vld [vmem:[#allocation10 + $0x24] sm:$0xf]
    %v364 = vld [vmem:[#allocation10 + $0x28] sm:$0xf]
    %v365 = vld [vmem:[#allocation10 + $0x2c] sm:$0xf]
    %v366 = vld [vmem:[#allocation10 + $0x30] sm:$0xf]
    %v367 = vld [vmem:[#allocation10 + $0x34] sm:$0xf]
    %v368 = vld [vmem:[#allocation10 + $0x38] sm:$0xf]
    %v369 = vld [vmem:[#allocation10 + $0x3c] sm:$0xf]
    %v370 = vld [vmem:[%s7] sm:$0x1]
    %v372 = vlaneseq
    %v373 = vshrl.u32 %v372, 7
    %v374 = vsub.s32 0, %v373
    %v375 = vrot.slane %v370, %v374
    %v393 = vunpack.c.l.b16 %v354
    %v394 = vunpack.c.l.b16 %v355
    %v395 = vunpack.c.l.b16 %v356
    %v396 = vunpack.c.l.b16 %v357
    %v397 = vunpack.c.l.b16 %v358
    %v398 = vunpack.c.l.b16 %v359
    %v399 = vunpack.c.l.b16 %v360
    %v400 = vunpack.c.l.b16 %v361
    %v401 = vunpack.c.l.b16 %v362
    %v402 = vunpack.c.l.b16 %v363
    %v403 = vunpack.c.l.b16 %v364
    %v404 = vunpack.c.l.b16 %v365
    %v405 = vunpack.c.l.b16 %v366
    %v406 = vunpack.c.l.b16 %v367
    %v407 = vunpack.c.l.b16 %v368
    %v408 = vunpack.c.l.b16 %v369
    %v409 = vpack.c.b16 %v394, %v393
    %v410 = vpack.c.b16 %v396, %v395
    %v411 = vpack.c.b16 %v398, %v397
    %v412 = vpack.c.b16 %v400, %v399
    %v413 = vpack.c.b16 %v402, %v401
    %v414 = vpack.c.b16 %v404, %v403
    %v415 = vpack.c.b16 %v406, %v405
    %v416 = vpack.c.b16 %v408, %v407
    %425 = vmatprep.subr.bf16.mxu0 0
    %426 = vmatpush1.bf16.msra.mxu0 %v409
    %427 = vmatprep.subr.bf16.mxu0 0
    %428 = vmatpush1.bf16.msra.mxu0 %v410
    %429 = vmatprep.subr.bf16.mxu0 0
    %430 = vmatpush1.bf16.msra.mxu0 %v411
    %431 = vmatprep.subr.bf16.mxu0 0
    %432 = vmatpush1.bf16.msra.mxu0 %v412
    %433 = vmatprep.subr.bf16.mxu0 0
    %434 = vmatpush1.bf16.msra.mxu0 %v413
    %435 = vmatprep.subr.bf16.mxu0 0
    %436 = vmatpush1.bf16.msra.mxu0 %v414
    %437 = vmatprep.subr.bf16.mxu0 0
    %438 = vmatpush1.bf16.msra.mxu0 %v415
    %439 = vmatprep.subr.bf16.mxu0 0
    %440 = vmatpush1.bf16.msra.mxu0 %v416
    %441 = vmatprep.subr.bf16.mxu0 0
    %442 = vmatpush1.bf16.msra.mxu0 0
    %443 = vmatprep.subr.bf16.mxu0 0
    %444 = vmatpush1.bf16.msra.mxu0 0
    %445 = vmatprep.subr.bf16.mxu0 0
    %446 = vmatpush1.bf16.msra.mxu0 0
    %447 = vmatprep.subr.bf16.mxu0 0
    %448 = vmatpush1.bf16.msra.mxu0 0
    %449 = vmatprep.subr.bf16.mxu0 0
    %450 = vmatpush1.bf16.msra.mxu0 0
    %451 = vmatprep.subr.bf16.mxu0 0
    %452 = vmatpush1.bf16.msra.mxu0 0
    %453 = vmatprep.subr.bf16.mxu0 0
    %454 = vmatpush1.bf16.msra.mxu0 0
    %455 = vmatprep.subr.bf16.mxu0 0
    %456 = vmatpush1.bf16.msra.mxu0 0
    %457 = vmatprep.mubr.bf16.mxu0 0
    %458 = vmatmul.mubr.bf16.gmra.mrb[0].mxu0 %v353
    %v459 = vpop.f32.mrb[0].mxu0
    %v460 = vadd.f32 %v375, %v459
    %v461 = vpop.f32.mrb[0].mxu0
    %v462 = vpop.f32.mrb[0].mxu0
    %v463 = vpop.f32.mrb[0].mxu0
    %464 = vdwg.mxu0
    %465 = vmax.xlane.f32.xlu0 %v460
    %v466 = vpop.xlane.xlu0 %465
    %v467 = vsub.f32 %v460, %v466
    %v468 = vmul.f32 %v467, 1.442695
    %v469 = vpow.pop %v468
    %470 = vadd.xlane.f32.xlu0 %v469
    %v471 = vpop.xlane.xlu0 %470
    %v472 = vlog2.pop %v471
    %v473 = vmul.f32 %v472, 0.6931472
    %v474 = vsub.f32 %v467, %v473
    %475 = vst [vmem:[%s8] sm:$0xff] %v474
    // Predicated region
    $region46: #{decoder_forward.1} parent=1 // pred_check
      _
    $region47: #{decoder_forward.1} parent=1 // pred_check_branch
      %477 = sbr.rel (0) target = $region49
    $region48: #{decoder_forward.1} parent=1 // pred_region
      _
    $region49: #{decoder_forward.1} parent=1 // pred_fallthru
      _
    // Predicated region
    $region50: #{decoder_forward.1} parent=1 // pred_check
      _
    $region51: #{decoder_forward.1} parent=1 // pred_check_branch
      %479 = sbr.rel (0) target = $region53
    $region52: #{decoder_forward.1} parent=1 // pred_region
      _
    $region53: #{decoder_forward.1} parent=1 // pred_fallthru
      _
    // Predicated region
    $region54: #{decoder_forward.1} parent=1 // pred_check
      _
    $region55: #{decoder_forward.1} parent=1 // pred_check_branch
      %481 = sbr.rel (0) target = $region57
    $region56: #{decoder_forward.1} parent=1 // pred_region
      _
    $region57: #{decoder_forward.1} parent=1 // pred_fallthru
      _
    // Predicated region
    $region58: #{decoder_forward.1} parent=1 // pred_check
      _
    $region59: #{decoder_forward.1} parent=1 // pred_check_branch
      %483 = sbr.rel (0) target = $region61
    $region60: #{decoder_forward.1} parent=1 // pred_region
      _
    $region61: #{decoder_forward.1} parent=1 // pred_fallthru
      _
    %484 = vsyncpa [#allocation6], 1
    %485 = vsyncpa [#allocation8], 1
    %486 = vsyncpa [#allocation11], 1

</llo_original>
